<compile_context>
chip_gen: v5e
topology: v5e:2x2
jax: 0.10.0
libtpu: 0.0.40
codegen_flags: <defaults>
</compile_context>

<pallas_src>
import jax
import jax.numpy as jnp
import numpy as np
from jax import lax
from jax.experimental import pallas as pl
from jax.experimental.pallas import tpu as pltpu


def _make_basic_block_kernel(H, W, Cin, Cmid, tap_concat_threshold):
    HW = H * W
    L = (H + 2) * W + 2          # fused, padded spatial length per channel row

    def conv3x3(src_ref, C, w_ref, mask_l, mask_r):
        """3x3 conv on a channel-major, spatially-fused (1, C, L) ref.

        w_ref is (Cout_, 9*C) with (kh, kw, cin) fused along the contraction
        dim.  Each tap is a constant-offset lane slice of length H*W; the
        missing zero W-padding is emulated by masking the w == 0 column for
        kw == 0 taps and the w == W-1 column for kw == 2 taps.
        """
        def tap(kh, kw):
            t = src_ref[0, :, kh * W + kw: kh * W + kw + HW]        # (C, HW) bf16
            if kw == 0:
                t = jnp.where(mask_l, t, 0)
            elif kw == 2:
                t = jnp.where(mask_r, t, 0)
            return t

        if C < tap_concat_threshold:
            # Small C: one MXU matmul with K = 9*C (better MXU occupancy).
            rhs = jnp.concatenate(
                [tap(kh, kw) for kh in range(3) for kw in range(3)], axis=0)
            return jnp.dot(w_ref[...], rhs,
                           preferred_element_type=jnp.float32)       # (Cout_, HW)

        # Large C: 9 accumulating dots, no materialized (9*C, HW) patches.
        acc = None
        for k in range(9):
            kh, kw = divmod(k, 3)
            d = jnp.dot(w_ref[:, k * C:(k + 1) * C], tap(kh, kw),
                        preferred_element_type=jnp.float32)
            acc = d if acc is None else acc + d
        return acc

    def kernel(xp_ref, w1_ref, b1_ref, w2_ref, b2_ref, o_ref, mid_ref):
        # xp_ref : (1, Cin, L)    bf16  fused, H-padded NCHW input
        # w1_ref : (Cmid, 9*Cin)  bf16  conv1 weights, BN1 scale folded in
        # b1_ref : (Cmid, 1)      f32   BN1 bias
        # w2_ref : (Cout, 9*Cmid) bf16  conv2 weights, BN2 scale folded in
        # b2_ref : (Cout, 1)      f32   BN2 bias
        # o_ref  : (1, Cout, H*W) f32   lane-dense NCHW output
        # mid_ref: (1, Cmid, L)   bf16  scratch: fused, padded conv1 output
        lane = lax.broadcasted_iota(jnp.int32, (1, HW), 1)
        col = lane % W
        mask_l = col != 0          # kill the fake w == -1 column (kw == 0 taps)
        mask_r = col != (W - 1)    # kill the fake w == W column  (kw == 2 taps)

        # ---- conv1 + BN1 (scale folded into w1) + ReLU ----------------------
        acc1 = conv3x3(xp_ref, Cin, w1_ref, mask_l, mask_r)          # (Cmid, HW) f32
        out1 = jnp.maximum(acc1 + b1_ref[...], 0.0)

        # One full-width store carries both the interior and the zero halo
        # (rows h = -1 / h = H plus the two guard lanes), so the scratch never
        # holds stale data even under the "parallel" batch grid axis.
        halo = jnp.zeros((Cmid, W + 1), mid_ref.dtype)
        mid_ref[0] = jnp.concatenate(
            [halo, out1.astype(mid_ref.dtype), halo], axis=-1)       # (Cmid, L)

        # ---- conv2 + BN2 + residual + ReLU ----------------------------------
        acc2 = conv3x3(mid_ref, Cmid, w2_ref, mask_l, mask_r)        # (Cout, HW) f32
        # Residual = interior lane slice of the (bf16) conv input itself: no
        # separate f32 residual stream over HBM, and it is already layout
        # aligned with the lane-dense NCHW output.
        res = xp_ref[0, :, W + 1: W + 1 + HW].astype(jnp.float32)    # (Cin, HW)
        o_ref[0] = jnp.maximum(acc2 + b2_ref[...] + res, 0.0)

    return kernel


def basic_block_pallas(x_nchw, w1, bn1, w2, bn2, *, eps=1e-5,
                       compute_dtype=jnp.bfloat16, tap_concat_threshold=128):
    """Forward of BasicBlock (stride=1, no downsample), eval-mode BN.

    x_nchw : (N, C, H, W) f32 (PyTorch layout).
    w1, w2 : (3, 3, Cin, Cout) HWIO conv weights (PyTorch OIHW -> transpose(2,3,1,0)).
    bn1/bn2: dicts with 1D "gamma", "beta", "mean", "var".
    Returns (N, C, H, W) f32.
    """
    N, C, H, W = x_nchw.shape
    Cmid = w1.shape[3]
    Cout = w2.shape[3]
    assert w1.shape == (3, 3, C, Cmid) and w2.shape == (3, 3, Cmid, Cout)
    # Residual path requires matching shapes (stride=1, downsample=None).
    assert Cout == C, "BasicBlock without downsample requires inplanes == planes"
    # TODO(synk): stride != 1 / downsample and training-mode BN not implemented.

    HW = H * W
    L = (H + 2) * W + 2

    # Fold eval-mode BN into a per-channel scale (pushed into the conv weights)
    # and a bias (added in-kernel in f32).
    def fold(bn):
        s = bn["gamma"] / jnp.sqrt(bn["var"] + eps)
        b = bn["beta"] - bn["mean"] * s
        return s, b

    s1, b1 = fold(bn1)
    s2, b2 = fold(bn2)

    # Weights as (Cout_, 9*Cin_) with (kh, kw, cin) fused along K.
    w1f = jnp.transpose(
        (w1 * s1[None, None, None, :]).reshape(9 * C, Cmid)).astype(compute_dtype)
    w2f = jnp.transpose(
        (w2 * s2[None, None, None, :]).reshape(9 * Cmid, Cout)).astype(compute_dtype)
    b1r = b1.reshape(Cmid, 1).astype(jnp.float32)
    b2r = b2.reshape(Cout, 1).astype(jnp.float32)

    # Channel-major, spatially-fused conv input: pad H by 1 on each side, fuse
    # (H+2, W) into one lane axis, then add one zero guard lane per side so
    # every 3x3 tap is an in-bounds, constant-offset lane slice.
    xh = jnp.pad(x_nchw, ((0, 0), (0, 0), (1, 1), (0, 0))).reshape(N, C, (H + 2) * W)
    xp = jnp.pad(xh, ((0, 0), (0, 0), (1, 1))).astype(compute_dtype)   # (N, C, L)

    kernel = _make_basic_block_kernel(H, W, C, Cmid, tap_concat_threshold)

    # Scoped-VMEM budget derived from the actual per-step block sizes
    # (double-buffered inputs/outputs + scratch + matmul temporaries).
    bf16, f32 = 2, 4
    est = (2 * (C * L * bf16                                     # xp block
                + Cout * HW * f32                                # out block
                + (Cmid * 9 * C + Cout * 9 * Cmid) * bf16        # weights
                + (Cmid + Cout) * f32)                           # biases
           + Cmid * L * bf16                                     # mid scratch
           + 2 * (9 * max(C, Cmid) * HW * bf16                   # tap temporaries
                  + (Cmid + Cout) * HW * f32))                   # f32 accumulators
    vmem_limit = int(min(max(2 * est, 32 * 1024 * 1024), 96 * 1024 * 1024))

    out = pl.pallas_call(
        kernel,
        out_shape=jax.ShapeDtypeStruct((N, Cout, HW), jnp.float32),
        grid_spec=pltpu.PrefetchScalarGridSpec(
            num_scalar_prefetch=0,
            grid=(N,),
            in_specs=[
                pl.BlockSpec((1, C, L), lambda n: (n, 0, 0)),
                # Weights / biases are grid-invariant (tiny at these sizes).
                pl.BlockSpec((Cmid, 9 * C), lambda n: (0, 0)),
                pl.BlockSpec((Cmid, 1), lambda n: (0, 0)),
                pl.BlockSpec((Cout, 9 * Cmid), lambda n: (0, 0)),
                pl.BlockSpec((Cout, 1), lambda n: (0, 0)),
            ],
            out_specs=pl.BlockSpec((1, Cout, HW), lambda n: (n, 0, 0)),
            scratch_shapes=[pltpu.VMEM((1, Cmid, L), compute_dtype)],
        ),
        compiler_params=pltpu.CompilerParams(
            # Images are independent -> shard the batch grid axis across both
            # v7x TensorCores; near no-op on single-TC v5e/v6e.
            dimension_semantics=("parallel",),
            vmem_limit_bytes=vmem_limit,
        ),
    )(xp, w1f, b1r, w2f, b2r)

    # (N, Cout, H*W) is already NCHW modulo a free reshape.
    return out.reshape(N, Cout, H, W)


def reference_basic_block_f32(x_nchw, w1, bn1, w2, bn2, eps=1e-5):
    """Pure f32 JAX reference matching the PyTorch module (eval-mode BN)."""
    x = jnp.transpose(x_nchw, (0, 2, 3, 1))

    def conv(a, w):
        return lax.conv_general_dilated(
            a, w, window_strides=(1, 1), padding="SAME",
            dimension_numbers=("NHWC", "HWIO", "NHWC"))

    def bn(y, p):
        s = p["gamma"] / jnp.sqrt(p["var"] + eps)
        b = p["beta"] - p["mean"] * s
        return y * s + b

    out = jnp.maximum(bn(conv(x, w1), bn1), 0.0)
    out = bn(conv(out, w2), bn2)
    out = jnp.maximum(out + x, 0.0)
    return jnp.transpose(out, (0, 3, 1, 2))


def reference_basic_block_matched(x_nchw, w1, bn1, w2, bn2, eps=1e-5,
                                  compute_dtype=jnp.bfloat16):
    """Reference with the kernel's precision policy: bf16 conv inputs/weights,
    f32 accumulation/epilogue, residual taken from the bf16 conv input,
    BN scale folded into the weights."""
    x = jnp.transpose(x_nchw, (0, 2, 3, 1))
    xc = x.astype(compute_dtype)

    def fold(bn):
        s = bn["gamma"] / jnp.sqrt(bn["var"] + eps)
        b = bn["beta"] - bn["mean"] * s
        return s, b

    s1, b1 = fold(bn1)
    s2, b2 = fold(bn2)
    w1f = (w1 * s1[None, None, None, :]).astype(compute_dtype)
    w2f = (w2 * s2[None, None, None, :]).astype(compute_dtype)

    def conv(a, w):
        return lax.conv_general_dilated(
            a, w, window_strides=(1, 1), padding="SAME",
            dimension_numbers=("NHWC", "HWIO", "NHWC"),
            preferred_element_type=jnp.float32)

    out1 = jnp.maximum(conv(xc, w1f) + b1, 0.0)            # f32
    out2 = conv(out1.astype(compute_dtype), w2f) + b2      # f32
    out = jnp.maximum(out2 + xc.astype(jnp.float32), 0.0)
    return jnp.transpose(out, (0, 3, 1, 2))


if __name__ == "__main__":
    # Small shapes consistent with BasicBlock(inplanes=planes, stride=1,
    # downsample=None).  Grid = N steps (one image per step).
    N, C, H, W = 4, 16, 16, 16

    key = jax.random.PRNGKey(0)
    (kx, kw1, kw2, kg1, kb1, km1, kv1, kg2, kb2, km2, kv2) = jax.random.split(key, 11)

    x_nchw = jax.random.normal(kx, (N, C, H, W), jnp.float32)

    # Conv weights in (kh, kw, Cin, Cout) layout (PyTorch OIHW -> HWIO).
    w1 = jax.random.normal(kw1, (3, 3, C, C), jnp.float32) * 0.1
    w2 = jax.random.normal(kw2, (3, 3, C, C), jnp.float32) * 0.1

    bn1 = {
        "gamma": jax.random.normal(kg1, (C,), jnp.float32) * 0.1 + 1.0,
        "beta": jax.random.normal(kb1, (C,), jnp.float32) * 0.1,
        "mean": jax.random.normal(km1, (C,), jnp.float32) * 0.1,
        "var": jax.random.uniform(kv1, (C,), jnp.float32, minval=0.5, maxval=1.5),
    }
    bn2 = {
        "gamma": jax.random.normal(kg2, (C,), jnp.float32) * 0.1 + 1.0,
        "beta": jax.random.normal(kb2, (C,), jnp.float32) * 0.1,
        "mean": jax.random.normal(km2, (C,), jnp.float32) * 0.1,
        "var": jax.random.uniform(kv2, (C,), jnp.float32, minval=0.5, maxval=1.5),
    }

    ref_m = jax.block_until_ready(
        reference_basic_block_matched(x_nchw, w1, bn1, w2, bn2))
    ref_f = jax.block_until_ready(
        reference_basic_block_f32(x_nchw, w1, bn1, w2, bn2))

    # Default small-channel path: taps concatenated into one K = 9*C matmul.
    out = jax.block_until_ready(basic_block_pallas(x_nchw, w1, bn1, w2, bn2))
    assert out.shape == (N, C, H, W)
    np.testing.assert_allclose(np.asarray(out), np.asarray(ref_m),
                               rtol=2e-3, atol=2e-3)
    np.testing.assert_allclose(np.asarray(out), np.asarray(ref_f),
                               rtol=5e-2, atol=1e-1)

    # Large-channel formulation (9 accumulating dots) forced on the same data.
    out9 = jax.block_until_ready(
        basic_block_pallas(x_nchw, w1, bn1, w2, bn2, tap_concat_threshold=1))
    np.testing.assert_allclose(np.asarray(out9), np.asarray(ref_m),
                               rtol=2e-3, atol=2e-3)

    print("KERNEL_OK")
</pallas_src>

<mosaic_0001>
module attributes {stable_mosaic.version = 11 : i64} {
  func.func @kernel(%arg0: i32, %arg1: memref<1x16x290xbf16, #tpu.memory_space<vmem>>, %arg2: memref<16x144xbf16, #tpu.memory_space<vmem>>, %arg3: memref<16x1xf32, #tpu.memory_space<vmem>>, %arg4: memref<16x144xbf16, #tpu.memory_space<vmem>>, %arg5: memref<16x1xf32, #tpu.memory_space<vmem>>, %arg6: memref<1x16x256xf32, #tpu.memory_space<vmem>>, %arg7: memref<1x16x290xbf16, #tpu.memory_space<vmem>>) attributes {dimension_semantics = [#tpu.dimension_semantics<parallel>], iteration_bounds = array<i64: 4>, scalar_prefetch = 0 : i64, scratch_operands = 1 : i64, tpu.core_type = #tpu.core_type<tc>, window_params = [{transform_indices = @transform_0, window_bounds = array<i64: 1, 16, 290>}, {pipeline_mode = #tpu.pipeline_mode<synchronous>, transform_indices = @transform_1, window_bounds = array<i64: 16, 144>}, {pipeline_mode = #tpu.pipeline_mode<synchronous>, transform_indices = @transform_2, window_bounds = array<i64: 16, 1>}, {pipeline_mode = #tpu.pipeline_mode<synchronous>, transform_indices = @transform_3, window_bounds = array<i64: 16, 144>}, {pipeline_mode = #tpu.pipeline_mode<synchronous>, transform_indices = @transform_4, window_bounds = array<i64: 16, 1>}, {transform_indices = @transform_5, window_bounds = array<i64: 1, 16, 256>}]} {
    %0 = tpu.iota {dimensions = array<i32: 1>} : vector<1x256xi32>
    %c16_i32 = arith.constant 16 : i32
    %c0_i32 = arith.constant 0 : i32
    %1 = arith.cmpi eq, %c16_i32, %c0_i32 : i32
    %c1_i32 = arith.constant 1 : i32
    %2 = arith.select %1, %c1_i32, %c16_i32 : i32
    %3 = vector.broadcast %2 : i32 to vector<1x256xi32>
    %4 = arith.remsi %0, %3 : vector<1x256xi32>
    %c0_i32_0 = arith.constant 0 : i32
    %5 = vector.broadcast %c0_i32_0 : i32 to vector<1x256xi32>
    %6 = arith.cmpi ne, %4, %5 : vector<1x256xi32>
    %c0_i32_1 = arith.constant 0 : i32
    %7 = vector.broadcast %c0_i32_1 : i32 to vector<1x256xi32>
    %8 = arith.cmpi slt, %4, %7 : vector<1x256xi32>
    %c0_i32_2 = arith.constant 0 : i32
    %9 = arith.cmpi slt, %2, %c0_i32_2 : i32
    %10 = vector.broadcast %9 : i1 to vector<1x256xi1>
    %11 = vector.broadcast %10 : vector<1x256xi1> to vector<1x256xi1>
    %12 = arith.xori %8, %11 : vector<1x256xi1>
    %13 = arith.andi %12, %6 : vector<1x256xi1>
    %14 = vector.broadcast %2 : i32 to vector<1x256xi32>
    %15 = arith.addi %4, %14 : vector<1x256xi32>
    %16 = arith.select %13, %15, %4 : vector<1x256xi1>, vector<1x256xi32>
    %c0_i32_3 = arith.constant 0 : i32
    %17 = vector.broadcast %c0_i32_3 : i32 to vector<1x256xi32>
    %18 = arith.cmpi ne, %16, %17 : vector<1x256xi32>
    %c15_i32 = arith.constant 15 : i32
    %19 = vector.broadcast %c15_i32 : i32 to vector<1x256xi32>
    %20 = arith.cmpi ne, %16, %19 : vector<1x256xi32>
    %c0 = arith.constant 0 : index
    %c0_4 = arith.constant 0 : index
    %c0_5 = arith.constant 0 : index
    %21 = vector.load %arg1[%c0, %c0_4, %c0_5] : memref<1x16x290xbf16, #tpu.memory_space<vmem>>, vector<1x16x256xbf16>
    %22 = vector.shape_cast %21 : vector<1x16x256xbf16> to vector<16x256xbf16>
    %c0_i32_6 = arith.constant 0 : i32
    %23 = arith.sitofp %c0_i32_6 : i32 to bf16
    %24 = vector.shape_cast %18 : vector<1x256xi1> to vector<1x256xi1>
    %25 = vector.broadcast %24 : vector<1x256xi1> to vector<16x256xi1>
    %26 = vector.broadcast %23 : bf16 to vector<16x256xbf16>
    %27 = arith.select %25, %22, %26 : vector<16x256xi1>, vector<16x256xbf16>
    %c0_7 = arith.constant 0 : index
    %c0_8 = arith.constant 0 : index
    %c1 = arith.constant 1 : index
    %28 = vector.load %arg1[%c0_7, %c0_8, %c1] : memref<1x16x290xbf16, #tpu.memory_space<vmem>>, vector<1x16x256xbf16>
    %29 = vector.shape_cast %28 : vector<1x16x256xbf16> to vector<16x256xbf16>
    %c0_9 = arith.constant 0 : index
    %c0_10 = arith.constant 0 : index
    %c2 = arith.constant 2 : index
    %30 = vector.load %arg1[%c0_9, %c0_10, %c2] : memref<1x16x290xbf16, #tpu.memory_space<vmem>>, vector<1x16x256xbf16>
    %31 = vector.shape_cast %30 : vector<1x16x256xbf16> to vector<16x256xbf16>
    %c0_i32_11 = arith.constant 0 : i32
    %32 = arith.sitofp %c0_i32_11 : i32 to bf16
    %33 = vector.shape_cast %20 : vector<1x256xi1> to vector<1x256xi1>
    %34 = vector.broadcast %33 : vector<1x256xi1> to vector<16x256xi1>
    %35 = vector.broadcast %32 : bf16 to vector<16x256xbf16>
    %36 = arith.select %34, %31, %35 : vector<16x256xi1>, vector<16x256xbf16>
    %c0_12 = arith.constant 0 : index
    %c0_13 = arith.constant 0 : index
    %c16 = arith.constant 16 : index
    %37 = vector.load %arg1[%c0_12, %c0_13, %c16] : memref<1x16x290xbf16, #tpu.memory_space<vmem>>, vector<1x16x256xbf16>
    %38 = vector.shape_cast %37 : vector<1x16x256xbf16> to vector<16x256xbf16>
    %c0_i32_14 = arith.constant 0 : i32
    %39 = arith.sitofp %c0_i32_14 : i32 to bf16
    %40 = vector.shape_cast %18 : vector<1x256xi1> to vector<1x256xi1>
    %41 = vector.broadcast %40 : vector<1x256xi1> to vector<16x256xi1>
    %42 = vector.broadcast %39 : bf16 to vector<16x256xbf16>
    %43 = arith.select %41, %38, %42 : vector<16x256xi1>, vector<16x256xbf16>
    %c0_15 = arith.constant 0 : index
    %c0_16 = arith.constant 0 : index
    %c17 = arith.constant 17 : index
    %44 = vector.load %arg1[%c0_15, %c0_16, %c17] : memref<1x16x290xbf16, #tpu.memory_space<vmem>>, vector<1x16x256xbf16>
    %45 = vector.shape_cast %44 : vector<1x16x256xbf16> to vector<16x256xbf16>
    %c0_17 = arith.constant 0 : index
    %c0_18 = arith.constant 0 : index
    %c18 = arith.constant 18 : index
    %46 = vector.load %arg1[%c0_17, %c0_18, %c18] : memref<1x16x290xbf16, #tpu.memory_space<vmem>>, vector<1x16x256xbf16>
    %47 = vector.shape_cast %46 : vector<1x16x256xbf16> to vector<16x256xbf16>
    %c0_i32_19 = arith.constant 0 : i32
    %48 = arith.sitofp %c0_i32_19 : i32 to bf16
    %49 = vector.shape_cast %20 : vector<1x256xi1> to vector<1x256xi1>
    %50 = vector.broadcast %49 : vector<1x256xi1> to vector<16x256xi1>
    %51 = vector.broadcast %48 : bf16 to vector<16x256xbf16>
    %52 = arith.select %50, %47, %51 : vector<16x256xi1>, vector<16x256xbf16>
    %c0_20 = arith.constant 0 : index
    %c0_21 = arith.constant 0 : index
    %c32 = arith.constant 32 : index
    %53 = vector.load %arg1[%c0_20, %c0_21, %c32] : memref<1x16x290xbf16, #tpu.memory_space<vmem>>, vector<1x16x256xbf16>
    %54 = vector.shape_cast %53 : vector<1x16x256xbf16> to vector<16x256xbf16>
    %c0_i32_22 = arith.constant 0 : i32
    %55 = arith.sitofp %c0_i32_22 : i32 to bf16
    %56 = vector.shape_cast %18 : vector<1x256xi1> to vector<1x256xi1>
    %57 = vector.broadcast %56 : vector<1x256xi1> to vector<16x256xi1>
    %58 = vector.broadcast %55 : bf16 to vector<16x256xbf16>
    %59 = arith.select %57, %54, %58 : vector<16x256xi1>, vector<16x256xbf16>
    %c0_23 = arith.constant 0 : index
    %c0_24 = arith.constant 0 : index
    %c33 = arith.constant 33 : index
    %60 = vector.load %arg1[%c0_23, %c0_24, %c33] : memref<1x16x290xbf16, #tpu.memory_space<vmem>>, vector<1x16x256xbf16>
    %61 = vector.shape_cast %60 : vector<1x16x256xbf16> to vector<16x256xbf16>
    %c0_25 = arith.constant 0 : index
    %c0_26 = arith.constant 0 : index
    %c34 = arith.constant 34 : index
    %62 = vector.load %arg1[%c0_25, %c0_26, %c34] : memref<1x16x290xbf16, #tpu.memory_space<vmem>>, vector<1x16x256xbf16>
    %63 = vector.shape_cast %62 : vector<1x16x256xbf16> to vector<16x256xbf16>
    %c0_i32_27 = arith.constant 0 : i32
    %64 = arith.sitofp %c0_i32_27 : i32 to bf16
    %65 = vector.shape_cast %20 : vector<1x256xi1> to vector<1x256xi1>
    %66 = vector.broadcast %65 : vector<1x256xi1> to vector<16x256xi1>
    %67 = vector.broadcast %64 : bf16 to vector<16x256xbf16>
    %68 = arith.select %66, %63, %67 : vector<16x256xi1>, vector<16x256xbf16>
    %69 = tpu.concatenate %27, %29, %36, %43, %45, %52, %59, %61, %68 in 0 : vector<16x256xbf16>, vector<16x256xbf16>, vector<16x256xbf16>, vector<16x256xbf16>, vector<16x256xbf16>, vector<16x256xbf16>, vector<16x256xbf16>, vector<16x256xbf16>, vector<16x256xbf16> -> vector<144x256xbf16>
    %c0_28 = arith.constant 0 : index
    %c0_29 = arith.constant 0 : index
    %70 = vector.load %arg2[%c0_28, %c0_29] : memref<16x144xbf16, #tpu.memory_space<vmem>>, vector<16x144xbf16>
    %cst = arith.constant dense<0.000000e+00> : vector<16x256xf32>
    %71 = tpu.matmul %70, %69, %cst {dimension_numbers = #tpu.dot_dimension_numbers<[1], [0], [0], [1], [0, 0, 1, 1], [], []>} : vector<16x144xbf16>, vector<144x256xbf16>, vector<16x256xf32> -> vector<16x256xf32>
    %c0_30 = arith.constant 0 : index
    %c0_31 = arith.constant 0 : index
    %72 = vector.load %arg3[%c0_30, %c0_31] : memref<16x1xf32, #tpu.memory_space<vmem>>, vector<16x1xf32>
    %73 = vector.broadcast %72 : vector<16x1xf32> to vector<16x256xf32>
    %74 = arith.addf %71, %73 : vector<16x256xf32>
    %cst_32 = arith.constant 0.000000e+00 : f32
    %75 = vector.broadcast %cst_32 : f32 to vector<16x256xf32>
    %76 = arith.maximumf %74, %75 : vector<16x256xf32>
    %cst_33 = arith.constant 0.000000e+00 : bf16
    %77 = vector.broadcast %cst_33 : bf16 to vector<16x17xbf16>
    %78 = arith.truncf %76 : vector<16x256xf32> to vector<16x256xbf16>
    %79 = tpu.concatenate %77, %78, %77 in 1 : vector<16x17xbf16>, vector<16x256xbf16>, vector<16x17xbf16> -> vector<16x290xbf16>
    %c0_34 = arith.constant 0 : index
    %c0_35 = arith.constant 0 : index
    %c0_36 = arith.constant 0 : index
    %80 = vector.load %arg7[%c0_34, %c0_35, %c0_36] : memref<1x16x290xbf16, #tpu.memory_space<vmem>>, vector<1x16x290xbf16>
    %81 = vector.shape_cast %80 : vector<1x16x290xbf16> to vector<16x290xbf16>
    %82 = vector.shape_cast %79 : vector<16x290xbf16> to vector<1x16x290xbf16>
    tpu.vector_store %arg7[%c0_34, %c0_35, %c0_36], %82 {strides = array<i32>} : memref<1x16x290xbf16, #tpu.memory_space<vmem>>, vector<1x16x290xbf16>,
    %c0_37 = arith.constant 0 : index
    %c0_38 = arith.constant 0 : index
    %c0_39 = arith.constant 0 : index
    %83 = vector.load %arg7[%c0_37, %c0_38, %c0_39] : memref<1x16x290xbf16, #tpu.memory_space<vmem>>, vector<1x16x256xbf16>
    %84 = vector.shape_cast %83 : vector<1x16x256xbf16> to vector<16x256xbf16>
    %c0_i32_40 = arith.constant 0 : i32
    %85 = arith.sitofp %c0_i32_40 : i32 to bf16
    %86 = vector.shape_cast %18 : vector<1x256xi1> to vector<1x256xi1>
    %87 = vector.broadcast %86 : vector<1x256xi1> to vector<16x256xi1>
    %88 = vector.broadcast %85 : bf16 to vector<16x256xbf16>
    %89 = arith.select %87, %84, %88 : vector<16x256xi1>, vector<16x256xbf16>
    %c0_41 = arith.constant 0 : index
    %c0_42 = arith.constant 0 : index
    %c1_43 = arith.constant 1 : index
    %90 = vector.load %arg7[%c0_41, %c0_42, %c1_43] : memref<1x16x290xbf16, #tpu.memory_space<vmem>>, vector<1x16x256xbf16>
    %91 = vector.shape_cast %90 : vector<1x16x256xbf16> to vector<16x256xbf16>
    %c0_44 = arith.constant 0 : index
    %c0_45 = arith.constant 0 : index
    %c2_46 = arith.constant 2 : index
    %92 = vector.load %arg7[%c0_44, %c0_45, %c2_46] : memref<1x16x290xbf16, #tpu.memory_space<vmem>>, vector<1x16x256xbf16>
    %93 = vector.shape_cast %92 : vector<1x16x256xbf16> to vector<16x256xbf16>
    %c0_i32_47 = arith.constant 0 : i32
    %94 = arith.sitofp %c0_i32_47 : i32 to bf16
    %95 = vector.shape_cast %20 : vector<1x256xi1> to vector<1x256xi1>
    %96 = vector.broadcast %95 : vector<1x256xi1> to vector<16x256xi1>
    %97 = vector.broadcast %94 : bf16 to vector<16x256xbf16>
    %98 = arith.select %96, %93, %97 : vector<16x256xi1>, vector<16x256xbf16>
    %c0_48 = arith.constant 0 : index
    %c0_49 = arith.constant 0 : index
    %c16_50 = arith.constant 16 : index
    %99 = vector.load %arg7[%c0_48, %c0_49, %c16_50] : memref<1x16x290xbf16, #tpu.memory_space<vmem>>, vector<1x16x256xbf16>
    %100 = vector.shape_cast %99 : vector<1x16x256xbf16> to vector<16x256xbf16>
    %c0_i32_51 = arith.constant 0 : i32
    %101 = arith.sitofp %c0_i32_51 : i32 to bf16
    %102 = vector.shape_cast %18 : vector<1x256xi1> to vector<1x256xi1>
    %103 = vector.broadcast %102 : vector<1x256xi1> to vector<16x256xi1>
    %104 = vector.broadcast %101 : bf16 to vector<16x256xbf16>
    %105 = arith.select %103, %100, %104 : vector<16x256xi1>, vector<16x256xbf16>
    %c0_52 = arith.constant 0 : index
    %c0_53 = arith.constant 0 : index
    %c17_54 = arith.constant 17 : index
    %106 = vector.load %arg7[%c0_52, %c0_53, %c17_54] : memref<1x16x290xbf16, #tpu.memory_space<vmem>>, vector<1x16x256xbf16>
    %107 = vector.shape_cast %106 : vector<1x16x256xbf16> to vector<16x256xbf16>
    %c0_55 = arith.constant 0 : index
    %c0_56 = arith.constant 0 : index
    %c18_57 = arith.constant 18 : index
    %108 = vector.load %arg7[%c0_55, %c0_56, %c18_57] : memref<1x16x290xbf16, #tpu.memory_space<vmem>>, vector<1x16x256xbf16>
    %109 = vector.shape_cast %108 : vector<1x16x256xbf16> to vector<16x256xbf16>
    %c0_i32_58 = arith.constant 0 : i32
    %110 = arith.sitofp %c0_i32_58 : i32 to bf16
    %111 = vector.shape_cast %20 : vector<1x256xi1> to vector<1x256xi1>
    %112 = vector.broadcast %111 : vector<1x256xi1> to vector<16x256xi1>
    %113 = vector.broadcast %110 : bf16 to vector<16x256xbf16>
    %114 = arith.select %112, %109, %113 : vector<16x256xi1>, vector<16x256xbf16>
    %c0_59 = arith.constant 0 : index
    %c0_60 = arith.constant 0 : index
    %c32_61 = arith.constant 32 : index
    %115 = vector.load %arg7[%c0_59, %c0_60, %c32_61] : memref<1x16x290xbf16, #tpu.memory_space<vmem>>, vector<1x16x256xbf16>
    %116 = vector.shape_cast %115 : vector<1x16x256xbf16> to vector<16x256xbf16>
    %c0_i32_62 = arith.constant 0 : i32
    %117 = arith.sitofp %c0_i32_62 : i32 to bf16
    %118 = vector.shape_cast %18 : vector<1x256xi1> to vector<1x256xi1>
    %119 = vector.broadcast %118 : vector<1x256xi1> to vector<16x256xi1>
    %120 = vector.broadcast %117 : bf16 to vector<16x256xbf16>
    %121 = arith.select %119, %116, %120 : vector<16x256xi1>, vector<16x256xbf16>
    %c0_63 = arith.constant 0 : index
    %c0_64 = arith.constant 0 : index
    %c33_65 = arith.constant 33 : index
    %122 = vector.load %arg7[%c0_63, %c0_64, %c33_65] : memref<1x16x290xbf16, #tpu.memory_space<vmem>>, vector<1x16x256xbf16>
    %123 = vector.shape_cast %122 : vector<1x16x256xbf16> to vector<16x256xbf16>
    %c0_66 = arith.constant 0 : index
    %c0_67 = arith.constant 0 : index
    %c34_68 = arith.constant 34 : index
    %124 = vector.load %arg7[%c0_66, %c0_67, %c34_68] : memref<1x16x290xbf16, #tpu.memory_space<vmem>>, vector<1x16x256xbf16>
    %125 = vector.shape_cast %124 : vector<1x16x256xbf16> to vector<16x256xbf16>
    %c0_i32_69 = arith.constant 0 : i32
    %126 = arith.sitofp %c0_i32_69 : i32 to bf16
    %127 = vector.shape_cast %20 : vector<1x256xi1> to vector<1x256xi1>
    %128 = vector.broadcast %127 : vector<1x256xi1> to vector<16x256xi1>
    %129 = vector.broadcast %126 : bf16 to vector<16x256xbf16>
    %130 = arith.select %128, %125, %129 : vector<16x256xi1>, vector<16x256xbf16>
    %131 = tpu.concatenate %89, %91, %98, %105, %107, %114, %121, %123, %130 in 0 : vector<16x256xbf16>, vector<16x256xbf16>, vector<16x256xbf16>, vector<16x256xbf16>, vector<16x256xbf16>, vector<16x256xbf16>, vector<16x256xbf16>, vector<16x256xbf16>, vector<16x256xbf16> -> vector<144x256xbf16>
    %c0_70 = arith.constant 0 : index
    %c0_71 = arith.constant 0 : index
    %132 = vector.load %arg4[%c0_70, %c0_71] : memref<16x144xbf16, #tpu.memory_space<vmem>>, vector<16x144xbf16>
    %cst_72 = arith.constant dense<0.000000e+00> : vector<16x256xf32>
    %133 = tpu.matmul %132, %131, %cst_72 {dimension_numbers = #tpu.dot_dimension_numbers<[1], [0], [0], [1], [0, 0, 1, 1], [], []>} : vector<16x144xbf16>, vector<144x256xbf16>, vector<16x256xf32> -> vector<16x256xf32>
    %c0_73 = arith.constant 0 : index
    %c0_74 = arith.constant 0 : index
    %c17_75 = arith.constant 17 : index
    %134 = vector.load %arg1[%c0_73, %c0_74, %c17_75] : memref<1x16x290xbf16, #tpu.memory_space<vmem>>, vector<1x16x256xbf16>
    %135 = vector.shape_cast %134 : vector<1x16x256xbf16> to vector<16x256xbf16>
    %136 = arith.extf %135 : vector<16x256xbf16> to vector<16x256xf32>
    %c0_76 = arith.constant 0 : index
    %c0_77 = arith.constant 0 : index
    %137 = vector.load %arg5[%c0_76, %c0_77] : memref<16x1xf32, #tpu.memory_space<vmem>>, vector<16x1xf32>
    %138 = vector.broadcast %137 : vector<16x1xf32> to vector<16x256xf32>
    %139 = arith.addf %133, %138 : vector<16x256xf32>
    %140 = arith.addf %139, %136 : vector<16x256xf32>
    %cst_78 = arith.constant 0.000000e+00 : f32
    %141 = vector.broadcast %cst_78 : f32 to vector<16x256xf32>
    %142 = arith.maximumf %140, %141 : vector<16x256xf32>
    %c0_79 = arith.constant 0 : index
    %c0_80 = arith.constant 0 : index
    %c0_81 = arith.constant 0 : index
    %143 = vector.load %arg6[%c0_79, %c0_80, %c0_81] : memref<1x16x256xf32, #tpu.memory_space<vmem>>, vector<1x16x256xf32>
    %144 = vector.shape_cast %143 : vector<1x16x256xf32> to vector<16x256xf32>
    %145 = vector.shape_cast %142 : vector<16x256xf32> to vector<1x16x256xf32>
    tpu.vector_store %arg6[%c0_79, %c0_80, %c0_81], %145 {strides = array<i32>} : memref<1x16x256xf32, #tpu.memory_space<vmem>>, vector<1x16x256xf32>,
    return
  }
  func.func @transform_0(%arg0: i32) -> (i32, i32, i32) {
    %c0_i32 = arith.constant 0 : i32
    %c0_i32_0 = arith.constant 0 : i32
    %c0_i32_1 = arith.constant 0 : i32
    return %arg0, %c0_i32, %c0_i32_0 : i32, i32, i32
  }
  func.func @transform_1(%arg0: i32) -> (i32, i32) {
    %c0_i32 = arith.constant 0 : i32
    %c0_i32_0 = arith.constant 0 : i32
    %c0_i32_1 = arith.constant 0 : i32
    return %c0_i32, %c0_i32_0 : i32, i32
  }
  func.func @transform_2(%arg0: i32) -> (i32, i32) {
    %c0_i32 = arith.constant 0 : i32
    %c0_i32_0 = arith.constant 0 : i32
    %c0_i32_1 = arith.constant 0 : i32
    return %c0_i32, %c0_i32_0 : i32, i32
  }
  func.func @transform_3(%arg0: i32) -> (i32, i32) {
    %c0_i32 = arith.constant 0 : i32
    %c0_i32_0 = arith.constant 0 : i32
    %c0_i32_1 = arith.constant 0 : i32
    return %c0_i32, %c0_i32_0 : i32, i32
  }
  func.func @transform_4(%arg0: i32) -> (i32, i32) {
    %c0_i32 = arith.constant 0 : i32
    %c0_i32_0 = arith.constant 0 : i32
    %c0_i32_1 = arith.constant 0 : i32
    return %c0_i32, %c0_i32_0 : i32, i32
  }
  func.func @transform_5(%arg0: i32) -> (i32, i32, i32) {
    %c0_i32 = arith.constant 0 : i32
    %c0_i32_0 = arith.constant 0 : i32
    %c0_i32_1 = arith.constant 0 : i32
    return %arg0, %c0_i32, %c0_i32_0 : i32, i32, i32
  }
}

</mosaic_0001>

<llo_original>
// kernel: tpu_custom_call.1
$region0: #{tpu_custom_call.1}
  #allocation0 [shape = 'u32[]', space=smem, size = 0x4, offset = 0x4, fixed_abs, tag = 'smem constant byte address 0x4 - core index']
  #allocation1 [shape = 'u32[72,128]{1,0:T(1,128)}', space=vmem, size = 0x9000, scoped, tag = 'internal scratch']
  #allocation2 [shape = 'bf16[1,16,290]{2,1,0:T(8,128)(2,1)}', space=vmem, size = 0x3000, scoped, tag = 'scratch operand']
  %s0 = inlined_call_operand.hbm [shape: bf16[4,16,290], index: 0, kind: input, shape index: {}]
  %s1 = inlined_call_operand.vmem [shape: bf16[16,144], index: 1, kind: input, shape index: {}]
  %s2 = inlined_call_operand.vmem [shape: f32[16,1], index: 2, kind: input, shape index: {}]
  %s3 = inlined_call_operand.vmem [shape: bf16[16,144], index: 3, kind: input, shape index: {}]
  %s4 = inlined_call_operand.vmem [shape: f32[16,1], index: 4, kind: input, shape index: {}]
  %s5 = inlined_call_operand.hbm [shape: f32[4,16,256], index: 5, kind: output, shape index: {}]
  %s6 = sld [smem:[#allocation0]]
  $region57: #{tpu_custom_call.1} parent=0
    _
  %s8 = ssub.s32 1, %s6
  %s9 = scalar_select 0, %s8, %s6
  $region1: #{tpu_custom_call.1} parent=0
    #allocation3 [shape = 'u8[24576]{0}', space=vmem, size = 0x6000, scoped, tag = 'input window, operand 0']
    #allocation4 [shape = 's32[2]{0}', space=sflag, size = 0x8, scoped, tag = 'scoped memory for tpu_custom_call.1']
    #allocation5 [shape = 's32[2]{0}', space=sflag, size = 0x8, scoped, tag = 'scoped memory for tpu_custom_call.1']
    #allocation6 [shape = 'u8[32768]{0}', space=vmem, size = 0x8000, scoped, tag = 'output window, operand 0']
    %10 = vsyncpa [#allocation4], 0
    %s11 = scalar_lea.sflag [#allocation4], 1
    %12 = vsyncpa %s11, 0
    %13 = vsyncpa [#allocation5], 0
    %s14 = scalar_lea.sflag [#allocation5], 1
    %15 = vsyncpa %s14, 0
    loop: start=0, step=1, limit=6
    $region2: #{tpu_custom_call.1} parent=1 // loop_pre_header
      _
    $region3: #{tpu_custom_call.1} parent=1 // loop_header
      %s17 = sphi 0, %s21
      %p18 = scmp.ge.s32.totalorder %s17, 6
      %s27 = sphi 0, %s29
      %s30 = sphi 0, %s27
      %s31 = sphi 0, %s30
      %s47 = sphi 0, %s31
      %s51 = sphi 0, %s51
      %s53 = sphi 0, %s51
      %s54 = sphi 0, %s53
      %s68 = sphi 0, %s54
      %s72 = sphi 0, %s72
      %s74 = sphi 0, %s72
      %s75 = sphi 0, %s74
      %s89 = sphi 0, %s75
      %s93 = sphi 0, %s93
      %s95 = sphi 0, %s93
      %s96 = sphi 0, %s95
      %s110 = sphi 0, %s96
      %s114 = sphi 0, %s114
      %s116 = sphi 0, %s114
      %s117 = sphi 0, %s116
      %s131 = sphi 0, %s117
      %s137 = sphi 0, %s139
      %s140 = sphi 0, %s137
      %s141 = sphi 0, %s140
      %s157 = sphi 0, %s141
    $region4: #{tpu_custom_call.1} parent=1 // loop_header_branch
      %20 = sbr.rel (%p18) target = $region8
    $region5: #{tpu_custom_call.1} parent=1 // loop_body
      %s22 = ssub.s32 %s17, 1
      %s23 = ssub.s32 %s17, 2
      %s24 = sadd.s32 %s17, 1
      %s25 = ssub.s32 %s17, %s24
      %p26 = scmp.eq.s32.totalorder %s25, 0
      %s28 = sadd.s32 %s27, 1
      %s29 = scalar_select %p26, %s27, %s28
      %p32 = pneg %p26
      %p33 = scmp.eq.s32.totalorder %s17, 3
      %p34 = por %p32, %p33
      %p35 = scmp.ne.s32.totalorder %s27, %s30
      %p36 = scmp.eq.s32.totalorder %s17, 0
      %p37 = por %p35, %p36
      %p38 = scmp.ne.s32.totalorder %s27, %s30
      %p39 = scmp.eq.s32.totalorder %s22, 3
      %p40 = por %p38, %p39
      %p41 = scmp.ne.s32.totalorder %s30, %s31
      %p42 = scmp.eq.s32.totalorder %s22, 0
      %p43 = por %p41, %p42
      %p44 = scmp.ne.s32.totalorder %s30, %s31
      %p45 = scmp.eq.s32.totalorder %s23, 3
      %p46 = por %p44, %p45
      %p48 = scmp.ne.s32.totalorder %s31, %s47
      %p49 = scmp.eq.s32.totalorder %s23, 0
      %p50 = por %p48, %p49
      %s52 = sadd.s32 %s51, 1
      %p55 = scmp.eq.s32.totalorder %s17, 3
      %p56 = scmp.ne.s32.totalorder %s51, %s53
      %p57 = scmp.eq.s32.totalorder %s17, 0
      %p58 = por %p56, %p57
      %p59 = scmp.ne.s32.totalorder %s51, %s53
      %p60 = scmp.eq.s32.totalorder %s22, 3
      %p61 = por %p59, %p60
      %p62 = scmp.ne.s32.totalorder %s53, %s54
      %p63 = scmp.eq.s32.totalorder %s22, 0
      %p64 = por %p62, %p63
      %p65 = scmp.ne.s32.totalorder %s53, %s54
      %p66 = scmp.eq.s32.totalorder %s23, 3
      %p67 = por %p65, %p66
      %p69 = scmp.ne.s32.totalorder %s54, %s68
      %p70 = scmp.eq.s32.totalorder %s23, 0
      %p71 = por %p69, %p70
      %s73 = sadd.s32 %s72, 1
      %p76 = scmp.eq.s32.totalorder %s17, 3
      %p77 = scmp.ne.s32.totalorder %s72, %s74
      %p78 = scmp.eq.s32.totalorder %s17, 0
      %p79 = por %p77, %p78
      %p80 = scmp.ne.s32.totalorder %s72, %s74
      %p81 = scmp.eq.s32.totalorder %s22, 3
      %p82 = por %p80, %p81
      %p83 = scmp.ne.s32.totalorder %s74, %s75
      %p84 = scmp.eq.s32.totalorder %s22, 0
      %p85 = por %p83, %p84
      %p86 = scmp.ne.s32.totalorder %s74, %s75
      %p87 = scmp.eq.s32.totalorder %s23, 3
      %p88 = por %p86, %p87
      %p90 = scmp.ne.s32.totalorder %s75, %s89
      %p91 = scmp.eq.s32.totalorder %s23, 0
      %p92 = por %p90, %p91
      %s94 = sadd.s32 %s93, 1
      %p97 = scmp.eq.s32.totalorder %s17, 3
      %p98 = scmp.ne.s32.totalorder %s93, %s95
      %p99 = scmp.eq.s32.totalorder %s17, 0
      %p100 = por %p98, %p99
      %p101 = scmp.ne.s32.totalorder %s93, %s95
      %p102 = scmp.eq.s32.totalorder %s22, 3
      %p103 = por %p101, %p102
      %p104 = scmp.ne.s32.totalorder %s95, %s96
      %p105 = scmp.eq.s32.totalorder %s22, 0
      %p106 = por %p104, %p105
      %p107 = scmp.ne.s32.totalorder %s95, %s96
      %p108 = scmp.eq.s32.totalorder %s23, 3
      %p109 = por %p107, %p108
      %p111 = scmp.ne.s32.totalorder %s96, %s110
      %p112 = scmp.eq.s32.totalorder %s23, 0
      %p113 = por %p111, %p112
      %s115 = sadd.s32 %s114, 1
      %p118 = scmp.eq.s32.totalorder %s17, 3
      %p119 = scmp.ne.s32.totalorder %s114, %s116
      %p120 = scmp.eq.s32.totalorder %s17, 0
      %p121 = por %p119, %p120
      %p122 = scmp.ne.s32.totalorder %s114, %s116
      %p123 = scmp.eq.s32.totalorder %s22, 3
      %p124 = por %p122, %p123
      %p125 = scmp.ne.s32.totalorder %s116, %s117
      %p126 = scmp.eq.s32.totalorder %s22, 0
      %p127 = por %p125, %p126
      %p128 = scmp.ne.s32.totalorder %s116, %s117
      %p129 = scmp.eq.s32.totalorder %s23, 3
      %p130 = por %p128, %p129
      %p132 = scmp.ne.s32.totalorder %s117, %s131
      %p133 = scmp.eq.s32.totalorder %s23, 0
      %p134 = por %p132, %p133
      %s135 = ssub.s32 %s17, %s24
      %p136 = scmp.eq.s32.totalorder %s135, 0
      %s138 = sadd.s32 %s137, 1
      %s139 = scalar_select %p136, %s137, %s138
      %p142 = pneg %p136
      %p143 = scmp.eq.s32.totalorder %s17, 3
      %p144 = por %p142, %p143
      %p145 = scmp.ne.s32.totalorder %s137, %s140
      %p146 = scmp.eq.s32.totalorder %s17, 0
      %p147 = por %p145, %p146
      %p148 = scmp.ne.s32.totalorder %s137, %s140
      %p149 = scmp.eq.s32.totalorder %s22, 3
      %p150 = por %p148, %p149
      %p151 = scmp.ne.s32.totalorder %s140, %s141
      %p152 = scmp.eq.s32.totalorder %s22, 0
      %p153 = por %p151, %p152
      %p154 = scmp.ne.s32.totalorder %s140, %s141
      %p155 = scmp.eq.s32.totalorder %s23, 3
      %p156 = por %p154, %p155
      %p158 = scmp.ne.s32.totalorder %s141, %s157
      %p159 = scmp.eq.s32.totalorder %s23, 0
      %p160 = por %p158, %p159
      %p161 = scmp.le.s32.totalorder 1, %s17
      %p162 = scmp.lt.s32.totalorder %s17, 5
      %p163 = pnand %p161, %p162
      %p164 = pneg %p163
      // Predicated region
      $region9: #{tpu_custom_call.1} parent=5 // pred_check
        _
      $region10: #{tpu_custom_call.1} parent=5 // pred_check_branch
        %166 = sbr.rel (%p163) target = $region12
      $region11: #{tpu_custom_call.1} parent=5 // pred_region
        %s167 = ssub.s32 %s17, 1
        // Predicated region
        $region13: #{tpu_custom_call.1} parent=11 // pred_check
          %p168 = pneg %p64
        $region14: #{tpu_custom_call.1} parent=11 // pred_check_branch
          %170 = sbr.rel (%p168) target = $region16
        $region15: #{tpu_custom_call.1} parent=11 // pred_region
          _
        $region16: #{tpu_custom_call.1} parent=11 // pred_fallthru
          _
        // Predicated region
        $region17: #{tpu_custom_call.1} parent=11 // pred_check
          %p171 = pneg %p85
        $region18: #{tpu_custom_call.1} parent=11 // pred_check_branch
          %173 = sbr.rel (%p171) target = $region20
        $region19: #{tpu_custom_call.1} parent=11 // pred_region
          _
        $region20: #{tpu_custom_call.1} parent=11 // pred_fallthru
          _
        // Predicated region
        $region21: #{tpu_custom_call.1} parent=11 // pred_check
          %p174 = pneg %p106
        $region22: #{tpu_custom_call.1} parent=11 // pred_check_branch
          %176 = sbr.rel (%p174) target = $region24
        $region23: #{tpu_custom_call.1} parent=11 // pred_region
          _
        $region24: #{tpu_custom_call.1} parent=11 // pred_fallthru
          _
        // Predicated region
        $region25: #{tpu_custom_call.1} parent=11 // pred_check
          %p177 = pneg %p127
        $region26: #{tpu_custom_call.1} parent=11 // pred_check_branch
          %179 = sbr.rel (%p177) target = $region28
        $region27: #{tpu_custom_call.1} parent=11 // pred_region
          _
        $region28: #{tpu_custom_call.1} parent=11 // pred_fallthru
          _
      $region12: #{tpu_custom_call.1} parent=5 // pred_fallthru
        _
      %p180 = scmp.lt.s32.totalorder %s17, 4
      // Predicated region
      $region29: #{tpu_custom_call.1} parent=5 // pred_check
        %p181 = pneg %p180
      $region30: #{tpu_custom_call.1} parent=5 // pred_check_branch
        %183 = sbr.rel (%p181) target = $region32
      $region31: #{tpu_custom_call.1} parent=5 // pred_region
        // Predicated region
        $region33: #{tpu_custom_call.1} parent=31 // pred_check
          %p184 = pneg %p37
        $region34: #{tpu_custom_call.1} parent=31 // pred_check_branch
          %186 = sbr.rel (%p184) target = $region36
        $region35: #{tpu_custom_call.1} parent=31 // pred_region
          %s187 = sand.u32 %s27, 1
          %s188 = scalar_lea.sflag [#allocation4], %s187
          %s189 = sand.u32 %s27, 1
          %s190 = smul.addr %s189, 24
          %s191 = scalar_lea.vmem [#allocation3], %s190
          %193 = vsyncadd %s188, 0
          %s194 = smul.addr %s17, 6
          %s195 = smul.addr %s194, 4
          %s196 = scalar_lea.hbm %s0, %s195
          %s197 = sshll.u32 %s196, 4
          %s198 = int_to_ptr.hbm [resolvable:$true] %s197
          %s199 = sshll.u32 %s191, 4
          %s200 = int_to_ptr.vmem [resolvable:$true] %s199
          %205 = dma.hbm_to_vmem [thread:$0]  %s198, 384, %s200, %s188, 192, 192, 12
        $region36: #{tpu_custom_call.1} parent=31 // pred_fallthru
          _
      $region32: #{tpu_custom_call.1} parent=5 // pred_fallthru
        _
      %p206 = scmp.le.s32.totalorder 1, %s17
      %p207 = scmp.lt.s32.totalorder %s17, 5
      %p208 = pnand %p206, %p207
      %p209 = pneg %p208
      // Predicated region
      $region37: #{tpu_custom_call.1} parent=5 // pred_check
        _
      $region38: #{tpu_custom_call.1} parent=5 // pred_check_branch
        %211 = sbr.rel (%p208) target = $region40
      $region39: #{tpu_custom_call.1} parent=5 // pred_region
        %s212 = ssub.s32 %s17, 1
        %s213 = sand.u32 %s30, 1
        %s214 = scalar_lea.sflag [#allocation4], %s213
        %s215 = sand.u32 %s30, 1
        %s216 = smul.addr %s215, 24
        %s217 = scalar_lea.vmem [#allocation3], %s216
        // Predicated region
        $region41: #{tpu_custom_call.1} parent=39 // pred_check
          %p218 = pneg %p43
        $region42: #{tpu_custom_call.1} parent=39 // pred_check_branch
          %220 = sbr.rel (%p218) target = $region44
        $region43: #{tpu_custom_call.1} parent=39 // pred_region
          %222 = dma.done %s214, 384
        $region44: #{tpu_custom_call.1} parent=39 // pred_fallthru
          _
        %s223 = sand.u32 %s30, 1
        %s224 = scalar_lea.sflag [#allocation4], %s223
        %s225 = sand.u32 %s30, 1
        %s226 = smul.addr %s225, 24
        %s227 = scalar_lea.vmem [#allocation3], %s226
        %p228 = pneg %p43
        %p229 = pneg %p40
        %p230 = pneg %p64
        %p231 = pneg %p61
        %p232 = pneg %p85
        %p233 = pneg %p82
        %p234 = pneg %p106
        %p235 = pneg %p103
        %p236 = pneg %p127
        %p237 = pneg %p124
        %p238 = pneg %p153
        %p239 = pneg %p150
        %s240 = sand.u32 %s140, 1
        %s241 = scalar_lea.sflag [#allocation5], %s240
        %s242 = sand.u32 %s140, 1
        %s243 = smul.addr %s242, 32
        %s244 = scalar_lea.vmem [#allocation6], %s243
        %v248 = vlaneseq
        %v249 = vand.u32 %v248, 127
        %v250 = vadd.s32 %v249, 128
        %vm251 = vcmp.lt.s32.totalorder %v249, 0
        %v252 = vsub.s32 0, %v249
        %v253 = vsel %vm251, %v252, %v249
        %v254 = vshrl.u32 %v253, 4
        %v255 = vand.u32 %v253, 15
        %v256 = vsub.s32 0, %v255
        %v257 = vsel %vm251, %v256, %v255
        %vm258 = vcmp.lt.s32.totalorder %v250, 0
        %v259 = vsub.s32 0, %v250
        %v260 = vsel %vm258, %v259, %v250
        %v261 = vshrl.u32 %v260, 4
        %v262 = vand.u32 %v260, 15
        %v263 = vsub.s32 0, %v262
        %v264 = vsel %vm258, %v263, %v262
        %vm265 = vcmp.ne.s32.totalorder %v257, 0
        %vm266 = vcmp.ne.s32.totalorder %v264, 0
        %vm267 = vcmp.lt.s32.totalorder %v257, 0
        %vm268 = vcmp.lt.s32.totalorder %v264, 0
        %vm269 = vmand %vm267, %vm265
        %vm270 = vmand %vm268, %vm266
        %v271 = vadd.s32 %v257, 16
        %v272 = vadd.s32 %v264, 16
        %v273 = vsel %vm269, %v271, %v257
        %v274 = vsel %vm270, %v272, %v264
        %vm275 = vcmp.ne.s32.totalorder %v273, 0
        %vm276 = vcmp.ne.s32.totalorder %v274, 0
        %vm277 = vcmp.ne.s32.totalorder %v273, 15
        %vm278 = vcmp.ne.s32.totalorder %v274, 15
        %v279 = vld [vmem:[%s217] sm:$0xff]
        %v280 = vld [vmem:[%s217 + $0xc] sm:$0xff]
        %v281 = vsel %vm275, 1, 0
        %v282 = vsel %vm276, 1, 0
        %vm283 = vcmp.eq.s32.totalorder %v281, 1
        %vm284 = vcmp.eq.s32.totalorder %v282, 1
        %vm285 = vmpackc.low %vm284, %vm283
        %v286 = vsel %vm285, %v279, 0
        %v287 = vsel %vm285, %v280, 0
        %v288 = vld [vmem:[%s217 + $0x8] sm:$0xf]
        %v289 = vld [vmem:[%s217 + $0x14] sm:$0xf]
        %v290 = vsel %vm277, 1, 0
        %v291 = vsel %vm278, 1, 0
        %vm292 = vcmp.eq.s32.totalorder %v290, 1
        %vm293 = vcmp.eq.s32.totalorder %v291, 1
        %vm294 = vmpackc.low %vm293, %vm292
        %v295 = vsel %vm294, 65537, 0
        %296 = vrot.lane.b32.xlu0 %v295, 2
        %v297 = vpop.permute.xlu0 %296
        %v298 = vrot.slane %v297, 4
        %vm299 = vcmask 15360
        %v300 = vsel %vm299, %v298, %v297
        %v301 = vunpack.c.l.b16 %v300
        %v302 = vunpack.c.h.b16 %v300
        %v303 = vunpack.c.l.b16 0
        %v304 = vunpack.c.h.b16 0
        %vm305 = vcmp.ne.s32.totalorder %v301, %v303
        %vm306 = vcmp.ne.s32.totalorder %v302, %v304
        %vm307 = vmpackc.low %vm306, %vm305
        %v308 = vunpack.c.l.b16 %v298
        %v309 = vunpack.c.h.b16 %v298
        %v310 = vunpack.c.l.b16 0
        %v311 = vunpack.c.h.b16 0
        %vm312 = vcmp.ne.s32.totalorder %v308, %v310
        %vm313 = vcmp.ne.s32.totalorder %v309, %v311
        %vm314 = vmpackc.low %vm313, %vm312
        %v315 = vsel %vm307, %v279, 0
        %v316 = vsel %vm314, %v288, 0
        %v317 = vsel %vm307, %v280, 0
        %v318 = vsel %vm314, %v289, 0
        %v319 = vsel %vm285, 65537, 0
        %320 = vrot.lane.b32.xlu0 %v319, 16
        %v321 = vpop.permute.xlu0 %320
        %v322 = vrot.slane %v321, 4
        %vm323 = vcmask 130048
        %v324 = vsel %vm323, %v322, %v321
        %v325 = vunpack.c.l.b16 %v324
        %v326 = vunpack.c.h.b16 %v324
        %v327 = vunpack.c.l.b16 0
        %v328 = vunpack.c.h.b16 0
        %vm329 = vcmp.ne.s32.totalorder %v325, %v327
        %vm330 = vcmp.ne.s32.totalorder %v326, %v328
        %vm331 = vmpackc.low %vm330, %vm329
        %v332 = vunpack.c.l.b16 %v322
        %v333 = vunpack.c.h.b16 %v322
        %v334 = vunpack.c.l.b16 0
        %v335 = vunpack.c.h.b16 0
        %vm336 = vcmp.ne.s32.totalorder %v332, %v334
        %vm337 = vcmp.ne.s32.totalorder %v333, %v335
        %vm338 = vmpackc.low %vm337, %vm336
        %v339 = vsel %vm331, %v279, 0
        %v340 = vsel %vm338, %v288, 0
        %v341 = vsel %vm331, %v280, 0
        %v342 = vsel %vm338, %v289, 0
        %343 = vrot.lane.b32.xlu0 %v295, 18
        %v344 = vpop.permute.xlu0 %343
        %v345 = vrot.slane %v344, 4
        %vm346 = vcmask 146432
        %v347 = vsel %vm346, %v345, %v344
        %v348 = vunpack.c.l.b16 %v347
        %v349 = vunpack.c.h.b16 %v347
        %v350 = vunpack.c.l.b16 0
        %v351 = vunpack.c.h.b16 0
        %vm352 = vcmp.ne.s32.totalorder %v348, %v350
        %vm353 = vcmp.ne.s32.totalorder %v349, %v351
        %vm354 = vmpackc.low %vm353, %vm352
        %v355 = vunpack.c.l.b16 %v345
        %v356 = vunpack.c.h.b16 %v345
        %v357 = vunpack.c.l.b16 0
        %v358 = vunpack.c.h.b16 0
        %vm359 = vcmp.ne.s32.totalorder %v355, %v357
        %vm360 = vcmp.ne.s32.totalorder %v356, %v358
        %vm361 = vmpackc.low %vm360, %vm359
        %v362 = vsel %vm354, %v279, 0
        %v363 = vsel %vm361, %v288, 0
        %v364 = vsel %vm354, %v280, 0
        %v365 = vsel %vm361, %v289, 0
        %366 = vrot.lane.b32.xlu0 %v319, 32
        %v367 = vpop.permute.xlu0 %366
        %v368 = vrot.slane %v367, 4
        %vm369 = vcmask 261120
        %v370 = vsel %vm369, %v368, %v367
        %v371 = vunpack.c.l.b16 %v370
        %v372 = vunpack.c.h.b16 %v370
        %v373 = vunpack.c.l.b16 0
        %v374 = vunpack.c.h.b16 0
        %vm375 = vcmp.ne.s32.totalorder %v371, %v373
        %vm376 = vcmp.ne.s32.totalorder %v372, %v374
        %vm377 = vmpackc.low %vm376, %vm375
        %v378 = vunpack.c.l.b16 %v368
        %v379 = vunpack.c.h.b16 %v368
        %v380 = vunpack.c.l.b16 0
        %v381 = vunpack.c.h.b16 0
        %vm382 = vcmp.ne.s32.totalorder %v378, %v380
        %vm383 = vcmp.ne.s32.totalorder %v379, %v381
        %vm384 = vmpackc.low %vm383, %vm382
        %v385 = vsel %vm377, %v279, 0
        %v386 = vsel %vm384, %v288, 0
        %v387 = vsel %vm377, %v280, 0
        %v388 = vsel %vm384, %v289, 0
        %389 = vrot.lane.b32.xlu0 %v295, 34
        %v390 = vpop.permute.xlu0 %389
        %v391 = vrot.slane %v390, 4
        %vm392 = vcmask 277504
        %v393 = vsel %vm392, %v391, %v390
        %v394 = vunpack.c.l.b16 %v393
        %v395 = vunpack.c.h.b16 %v393
        %v396 = vunpack.c.l.b16 0
        %v397 = vunpack.c.h.b16 0
        %vm398 = vcmp.ne.s32.totalorder %v394, %v396
        %vm399 = vcmp.ne.s32.totalorder %v395, %v397
        %vm400 = vmpackc.low %vm399, %vm398
        %v401 = vunpack.c.l.b16 %v391
        %v402 = vunpack.c.h.b16 %v391
        %v403 = vunpack.c.l.b16 0
        %v404 = vunpack.c.h.b16 0
        %vm405 = vcmp.ne.s32.totalorder %v401, %v403
        %vm406 = vcmp.ne.s32.totalorder %v402, %v404
        %vm407 = vmpackc.low %vm406, %vm405
        %v408 = vsel %vm400, %v279, 0
        %v409 = vsel %vm407, %v288, 0
        %v410 = vsel %vm400, %v280, 0
        %v411 = vsel %vm407, %v289, 0
        %v414 = vunpack.c.l.b16 %v286
        %v415 = vunpack.c.h.b16 %v286
        %v416 = vunpack.c.l.b16 %v287
        %v417 = vunpack.c.h.b16 %v287
        %v418 = vpack.c.b16 %v416, %v414
        %v419 = vpack.c.b16 %v417, %v415
        %v426 = vunpack.c.l.b16 %v279
        %v427 = vunpack.c.h.b16 %v279
        %v428 = vunpack.c.l.b16 %v288
        %v429 = vunpack.c.l.b16 %v280
        %v430 = vunpack.c.h.b16 %v280
        %v431 = vunpack.c.l.b16 %v289
        %v432 = vpack.c.b16 %v429, %v426
        %v433 = vpack.c.b16 %v430, %v427
        %v434 = vpack.c.b16 %v431, %v428
        %435 = vrot.lane.b32.xlu0 %v432, 127
        %v436 = vpop.permute.xlu0 %435
        %437 = vrot.lane.b32.xlu0 %v433, 127
        %v438 = vpop.permute.xlu0 %437
        %439 = vrot.lane.b32.xlu0 %v434, 127
        %v440 = vpop.permute.xlu0 %439
        %vm441 = vcmask 1039360
        %v442 = vsel %vm441, %v436, %v438
        %v443 = vsel %vm441, %v438, %v440
        %v450 = vunpack.c.l.b16 %v315
        %v451 = vunpack.c.h.b16 %v315
        %v452 = vunpack.c.l.b16 %v316
        %v453 = vunpack.c.l.b16 %v317
        %v454 = vunpack.c.h.b16 %v317
        %v455 = vunpack.c.l.b16 %v318
        %v456 = vpack.c.b16 %v453, %v450
        %v457 = vpack.c.b16 %v454, %v451
        %v458 = vpack.c.b16 %v455, %v452
        %459 = vrot.lane.b32.xlu0 %v456, 126
        %v460 = vpop.permute.xlu0 %459
        %461 = vrot.lane.b32.xlu0 %v457, 126
        %v462 = vpop.permute.xlu0 %461
        %463 = vrot.lane.b32.xlu0 %v458, 126
        %v464 = vpop.permute.xlu0 %463
        %vm465 = vcmask 1031168
        %v466 = vsel %vm465, %v460, %v462
        %v467 = vsel %vm465, %v462, %v464
        %v474 = vunpack.c.l.b16 %v339
        %v475 = vunpack.c.h.b16 %v339
        %v476 = vunpack.c.l.b16 %v340
        %v477 = vunpack.c.l.b16 %v341
        %v478 = vunpack.c.h.b16 %v341
        %v479 = vunpack.c.l.b16 %v342
        %v480 = vpack.c.b16 %v477, %v474
        %v481 = vpack.c.b16 %v478, %v475
        %v482 = vpack.c.b16 %v479, %v476
        %483 = vrot.lane.b32.xlu0 %v480, 112
        %v484 = vpop.permute.xlu0 %483
        %485 = vrot.lane.b32.xlu0 %v481, 112
        %v486 = vpop.permute.xlu0 %485
        %487 = vrot.lane.b32.xlu0 %v482, 112
        %v488 = vpop.permute.xlu0 %487
        %vm489 = vcmask 916480
        %v490 = vsel %vm489, %v484, %v486
        %v491 = vsel %vm489, %v486, %v488
        %494 = vrot.lane.b32.xlu0 %v432, 111
        %v495 = vpop.permute.xlu0 %494
        %496 = vrot.lane.b32.xlu0 %v433, 111
        %v497 = vpop.permute.xlu0 %496
        %498 = vrot.lane.b32.xlu0 %v434, 111
        %v499 = vpop.permute.xlu0 %498
        %vm500 = vcmask 908288
        %v501 = vsel %vm500, %v495, %v497
        %v502 = vsel %vm500, %v497, %v499
        %v509 = vunpack.c.l.b16 %v362
        %v510 = vunpack.c.h.b16 %v362
        %v511 = vunpack.c.l.b16 %v363
        %v512 = vunpack.c.l.b16 %v364
        %v513 = vunpack.c.h.b16 %v364
        %v514 = vunpack.c.l.b16 %v365
        %v515 = vpack.c.b16 %v512, %v509
        %v516 = vpack.c.b16 %v513, %v510
        %v517 = vpack.c.b16 %v514, %v511
        %518 = vrot.lane.b32.xlu0 %v515, 110
        %v519 = vpop.permute.xlu0 %518
        %520 = vrot.lane.b32.xlu0 %v516, 110
        %v521 = vpop.permute.xlu0 %520
        %522 = vrot.lane.b32.xlu0 %v517, 110
        %v523 = vpop.permute.xlu0 %522
        %vm524 = vcmask 900096
        %v525 = vsel %vm524, %v519, %v521
        %v526 = vsel %vm524, %v521, %v523
        %v533 = vunpack.c.l.b16 %v385
        %v534 = vunpack.c.h.b16 %v385
        %v535 = vunpack.c.l.b16 %v386
        %v536 = vunpack.c.l.b16 %v387
        %v537 = vunpack.c.h.b16 %v387
        %v538 = vunpack.c.l.b16 %v388
        %v539 = vpack.c.b16 %v536, %v533
        %v540 = vpack.c.b16 %v537, %v534
        %v541 = vpack.c.b16 %v538, %v535
        %542 = vrot.lane.b32.xlu0 %v539, 96
        %v543 = vpop.permute.xlu0 %542
        %544 = vrot.lane.b32.xlu0 %v540, 96
        %v545 = vpop.permute.xlu0 %544
        %546 = vrot.lane.b32.xlu0 %v541, 96
        %v547 = vpop.permute.xlu0 %546
        %vm548 = vcmask 785408
        %v549 = vsel %vm548, %v543, %v545
        %v550 = vsel %vm548, %v545, %v547
        %553 = vrot.lane.b32.xlu0 %v432, 95
        %v554 = vpop.permute.xlu0 %553
        %555 = vrot.lane.b32.xlu0 %v433, 95
        %v556 = vpop.permute.xlu0 %555
        %557 = vrot.lane.b32.xlu0 %v434, 95
        %v558 = vpop.permute.xlu0 %557
        %vm559 = vcmask 777216
        %v560 = vsel %vm559, %v554, %v556
        %v561 = vsel %vm559, %v556, %v558
        %v568 = vunpack.c.l.b16 %v408
        %v569 = vunpack.c.h.b16 %v408
        %v570 = vunpack.c.l.b16 %v409
        %v571 = vunpack.c.l.b16 %v410
        %v572 = vunpack.c.h.b16 %v410
        %v573 = vunpack.c.l.b16 %v411
        %v574 = vpack.c.b16 %v571, %v568
        %v575 = vpack.c.b16 %v572, %v569
        %v576 = vpack.c.b16 %v573, %v570
        %577 = vrot.lane.b32.xlu0 %v574, 94
        %v578 = vpop.permute.xlu0 %577
        %579 = vrot.lane.b32.xlu0 %v575, 94
        %v580 = vpop.permute.xlu0 %579
        %581 = vrot.lane.b32.xlu0 %v576, 94
        %v582 = vpop.permute.xlu0 %581
        %vm583 = vcmask 769024
        %v584 = vsel %vm583, %v578, %v580
        %v585 = vsel %vm583, %v580, %v582
        %v588 = vld [vmem:[%s1] sm:$0xff]
        %v589 = vld [vmem:[%s1 + $0x8] sm:$0xff]
        %v590 = vld [vmem:[%s2] sm:$0xff]
        %v591 = vld [vmem:[%s2 + $0x8] sm:$0xff]
        %593 = vset.pattern.permute.xlu0 0
        %594 = vperm.xlu0 %593, %v590
        %v595 = vpop.permute.xlu0 %594
        %598 = vset.pattern.permute.xlu0 0
        %599 = vperm.xlu0 %598, %v591
        %v600 = vpop.permute.xlu0 %599
        %v604 = vunpack.c.l.b16 %v588
        %v605 = vunpack.c.h.b16 %v588
        %v606 = vunpack.c.l.b16 %v589
        %v607 = vunpack.c.h.b16 %v589
        %v608 = vpack.c.b16 %v606, %v604
        %v609 = vpack.c.b16 %v607, %v605
        %vm611 = vcmask 130048
        %v613 = vsel %vm611, %v609, 0
        %615 = vmatpush.bf16.msra.mxu0 %v560
        %616 = vmatpush.bf16.msra.mxu0 %v549
        %617 = vmatpush.bf16.msra.mxu0 %v525
        %618 = vmatpush.bf16.msra.mxu0 %v501
        %619 = vmatpush.bf16.msra.mxu0 %v490
        %620 = vmatpush.bf16.msra.mxu0 %v466
        %621 = vmatpush.bf16.msra.mxu0 %v442
        %622 = vmatpush.bf16.msra.mxu0 %v418
        %623 = vmatmul.bf16.gmra.mxu0 %v608
        %v624 = vpop.f32.mrf.mxu0
        %v625 = vadd.f32 %v595, %v624
        %v626 = vpop.f32.mrf.mxu0
        %v627 = vadd.f32 %v600, %v626
        %628 = vdwg.mxu0
        %629 = vmatpush.bf16.msra.mxu0 0
        %630 = vmatpush.bf16.msra.mxu0 0
        %631 = vmatpush.bf16.msra.mxu0 0
        %632 = vmatpush.bf16.msra.mxu0 0
        %633 = vmatpush.bf16.msra.mxu0 0
        %634 = vmatpush.bf16.msra.mxu0 0
        %635 = vmatpush.bf16.msra.mxu0 0
        %636 = vmatpush.bf16.msra.mxu0 %v584
        %637 = vmatmul.bf16.gmra.mxu0 %v613
        %v638 = vpop.f32.mrf.mxu0
        %v639 = vadd.f32 %v625, %v638
        %v640 = vpop.f32.mrf.mxu0
        %v641 = vadd.f32 %v627, %v640
        %642 = vdwg.mxu0
        %643 = vmatpush.bf16.msra.mxu0 %v561
        %644 = vmatpush.bf16.msra.mxu0 %v550
        %645 = vmatpush.bf16.msra.mxu0 %v526
        %646 = vmatpush.bf16.msra.mxu0 %v502
        %647 = vmatpush.bf16.msra.mxu0 %v491
        %648 = vmatpush.bf16.msra.mxu0 %v467
        %649 = vmatpush.bf16.msra.mxu0 %v443
        %650 = vmatpush.bf16.msra.mxu0 %v419
        %651 = vmatmul.bf16.gmra.mxu0 %v608
        %v652 = vpop.f32.mrf.mxu0
        %v653 = vadd.f32 %v595, %v652
        %v654 = vpop.f32.mrf.mxu0
        %v655 = vadd.f32 %v600, %v654
        %656 = vdwg.mxu0
        %657 = vmatpush.bf16.msra.mxu0 0
        %658 = vmatpush.bf16.msra.mxu0 0
        %659 = vmatpush.bf16.msra.mxu0 0
        %660 = vmatpush.bf16.msra.mxu0 0
        %661 = vmatpush.bf16.msra.mxu0 0
        %662 = vmatpush.bf16.msra.mxu0 0
        %663 = vmatpush.bf16.msra.mxu0 0
        %664 = vmatpush.bf16.msra.mxu0 %v585
        %665 = vmatmul.bf16.gmra.mxu0 %v613
        %v666 = vpop.f32.mrf.mxu0
        %v667 = vadd.f32 %v653, %v666
        %v668 = vpop.f32.mrf.mxu0
        %v669 = vadd.f32 %v655, %v668
        %670 = vdwg.mxu0
        %v671 = vmax.f32 %v639, 0.0
        %v672 = vmax.f32 %v667, 0.0
        %v673 = vmax.f32 %v641, 0.0
        %v674 = vmax.f32 %v669, 0.0
        %v675 = vpack.c.bf16 %v672, %v671
        %v676 = vpack.c.bf16 %v674, %v673
        %v679 = vunpack.c.l.b16 %v675
        %v680 = vunpack.c.h.b16 %v675
        %v681 = vunpack.c.l.b16 %v676
        %v682 = vunpack.c.h.b16 %v676
        %v683 = vpack.c.b16 %v681, %v679
        %v684 = vpack.c.b16 %v682, %v680
        %685 = vrot.lane.b32.xlu0 %v683, 17
        %v686 = vpop.permute.xlu0 %685
        %687 = vrot.lane.b32.xlu0 %v684, 17
        %v688 = vpop.permute.xlu0 %687
        %vm689 = vcmask 138240
        %v690 = vsel %vm689, %v686, %v688
        %vm691 = vcmask 138240
        %v694 = vsel %vm691, 0, %v686
        %v696 = vsel %vm691, %v688, 0
        %v699 = vunpack.c.l.b16 %v694
        %v700 = vunpack.c.l.b16 %v690
        %v701 = vunpack.c.l.b16 %v696
        %v702 = vunpack.c.h.b16 %v694
        %v703 = vunpack.c.h.b16 %v690
        %v704 = vunpack.c.h.b16 %v696
        %v705 = vpack.c.b16 %v700, %v699
        %v706 = vpack.c.b16 %v701, %v701
        %v707 = vpack.c.b16 %v703, %v702
        %v708 = vpack.c.b16 %v704, %v704
        %713 = vst [vmem:[#allocation2] sm:$0xff] %v705
        %vm714 = vcmask 273408
        %715 = vst.msk [vmem:[#allocation2 + $0x8] sm:$0xf] %vm714, %v706
        %716 = vst [vmem:[#allocation2 + $0xc] sm:$0xff] %v707
        %717 = vst.msk [vmem:[#allocation2 + $0x14] sm:$0xf] %vm714, %v708
        %v718 = vld [vmem:[#allocation2] sm:$0xff]
        %v719 = vld [vmem:[#allocation2 + $0xc] sm:$0xff]
        %v720 = vsel %vm285, %v718, 0
        %v721 = vsel %vm285, %v719, 0
        %v722 = vld [vmem:[#allocation2 + $0x8] sm:$0xf]
        %v723 = vld [vmem:[#allocation2 + $0x14] sm:$0xf]
        %v724 = vsel %vm307, %v718, 0
        %v725 = vsel %vm314, %v722, 0
        %v726 = vsel %vm307, %v719, 0
        %v727 = vsel %vm314, %v723, 0
        %v728 = vsel %vm331, %v718, 0
        %v729 = vsel %vm338, %v722, 0
        %v730 = vsel %vm331, %v719, 0
        %v731 = vsel %vm338, %v723, 0
        %v732 = vsel %vm354, %v718, 0
        %v733 = vsel %vm361, %v722, 0
        %v734 = vsel %vm354, %v719, 0
        %v735 = vsel %vm361, %v723, 0
        %v736 = vsel %vm377, %v718, 0
        %v737 = vsel %vm384, %v722, 0
        %v738 = vsel %vm377, %v719, 0
        %v739 = vsel %vm384, %v723, 0
        %v740 = vsel %vm400, %v718, 0
        %v741 = vsel %vm407, %v722, 0
        %v742 = vsel %vm400, %v719, 0
        %v743 = vsel %vm407, %v723, 0
        %v746 = vunpack.c.l.b16 %v720
        %v747 = vunpack.c.h.b16 %v720
        %v748 = vunpack.c.l.b16 %v721
        %v749 = vunpack.c.h.b16 %v721
        %v750 = vpack.c.b16 %v748, %v746
        %v751 = vpack.c.b16 %v749, %v747
        %v758 = vunpack.c.l.b16 %v718
        %v759 = vunpack.c.h.b16 %v718
        %v760 = vunpack.c.l.b16 %v722
        %v761 = vunpack.c.l.b16 %v719
        %v762 = vunpack.c.h.b16 %v719
        %v763 = vunpack.c.l.b16 %v723
        %v764 = vpack.c.b16 %v761, %v758
        %v765 = vpack.c.b16 %v762, %v759
        %v766 = vpack.c.b16 %v763, %v760
        %767 = vrot.lane.b32.xlu0 %v764, 127
        %v768 = vpop.permute.xlu0 %767
        %769 = vrot.lane.b32.xlu0 %v765, 127
        %v770 = vpop.permute.xlu0 %769
        %771 = vrot.lane.b32.xlu0 %v766, 127
        %v772 = vpop.permute.xlu0 %771
        %v773 = vsel %vm441, %v768, %v770
        %v774 = vsel %vm441, %v770, %v772
        %v781 = vunpack.c.l.b16 %v724
        %v782 = vunpack.c.h.b16 %v724
        %v783 = vunpack.c.l.b16 %v725
        %v784 = vunpack.c.l.b16 %v726
        %v785 = vunpack.c.h.b16 %v726
        %v786 = vunpack.c.l.b16 %v727
        %v787 = vpack.c.b16 %v784, %v781
        %v788 = vpack.c.b16 %v785, %v782
        %v789 = vpack.c.b16 %v786, %v783
        %790 = vrot.lane.b32.xlu0 %v787, 126
        %v791 = vpop.permute.xlu0 %790
        %792 = vrot.lane.b32.xlu0 %v788, 126
        %v793 = vpop.permute.xlu0 %792
        %794 = vrot.lane.b32.xlu0 %v789, 126
        %v795 = vpop.permute.xlu0 %794
        %v796 = vsel %vm465, %v791, %v793
        %v797 = vsel %vm465, %v793, %v795
        %v804 = vunpack.c.l.b16 %v728
        %v805 = vunpack.c.h.b16 %v728
        %v806 = vunpack.c.l.b16 %v729
        %v807 = vunpack.c.l.b16 %v730
        %v808 = vunpack.c.h.b16 %v730
        %v809 = vunpack.c.l.b16 %v731
        %v810 = vpack.c.b16 %v807, %v804
        %v811 = vpack.c.b16 %v808, %v805
        %v812 = vpack.c.b16 %v809, %v806
        %813 = vrot.lane.b32.xlu0 %v810, 112
        %v814 = vpop.permute.xlu0 %813
        %815 = vrot.lane.b32.xlu0 %v811, 112
        %v816 = vpop.permute.xlu0 %815
        %817 = vrot.lane.b32.xlu0 %v812, 112
        %v818 = vpop.permute.xlu0 %817
        %v819 = vsel %vm489, %v814, %v816
        %v820 = vsel %vm489, %v816, %v818
        %823 = vrot.lane.b32.xlu0 %v764, 111
        %v824 = vpop.permute.xlu0 %823
        %825 = vrot.lane.b32.xlu0 %v765, 111
        %v826 = vpop.permute.xlu0 %825
        %827 = vrot.lane.b32.xlu0 %v766, 111
        %v828 = vpop.permute.xlu0 %827
        %v829 = vsel %vm500, %v824, %v826
        %v830 = vsel %vm500, %v826, %v828
        %v837 = vunpack.c.l.b16 %v732
        %v838 = vunpack.c.h.b16 %v732
        %v839 = vunpack.c.l.b16 %v733
        %v840 = vunpack.c.l.b16 %v734
        %v841 = vunpack.c.h.b16 %v734
        %v842 = vunpack.c.l.b16 %v735
        %v843 = vpack.c.b16 %v840, %v837
        %v844 = vpack.c.b16 %v841, %v838
        %v845 = vpack.c.b16 %v842, %v839
        %846 = vrot.lane.b32.xlu0 %v843, 110
        %v847 = vpop.permute.xlu0 %846
        %848 = vrot.lane.b32.xlu0 %v844, 110
        %v849 = vpop.permute.xlu0 %848
        %850 = vrot.lane.b32.xlu0 %v845, 110
        %v851 = vpop.permute.xlu0 %850
        %v852 = vsel %vm524, %v847, %v849
        %v853 = vsel %vm524, %v849, %v851
        %v860 = vunpack.c.l.b16 %v736
        %v861 = vunpack.c.h.b16 %v736
        %v862 = vunpack.c.l.b16 %v737
        %v863 = vunpack.c.l.b16 %v738
        %v864 = vunpack.c.h.b16 %v738
        %v865 = vunpack.c.l.b16 %v739
        %v866 = vpack.c.b16 %v863, %v860
        %v867 = vpack.c.b16 %v864, %v861
        %v868 = vpack.c.b16 %v865, %v862
        %869 = vrot.lane.b32.xlu0 %v866, 96
        %v870 = vpop.permute.xlu0 %869
        %871 = vrot.lane.b32.xlu0 %v867, 96
        %v872 = vpop.permute.xlu0 %871
        %873 = vrot.lane.b32.xlu0 %v868, 96
        %v874 = vpop.permute.xlu0 %873
        %v875 = vsel %vm548, %v870, %v872
        %v876 = vsel %vm548, %v872, %v874
        %879 = vrot.lane.b32.xlu0 %v764, 95
        %v880 = vpop.permute.xlu0 %879
        %881 = vrot.lane.b32.xlu0 %v765, 95
        %v882 = vpop.permute.xlu0 %881
        %883 = vrot.lane.b32.xlu0 %v766, 95
        %v884 = vpop.permute.xlu0 %883
        %v885 = vsel %vm559, %v880, %v882
        %v886 = vsel %vm559, %v882, %v884
        %v893 = vunpack.c.l.b16 %v740
        %v894 = vunpack.c.h.b16 %v740
        %v895 = vunpack.c.l.b16 %v741
        %v896 = vunpack.c.l.b16 %v742
        %v897 = vunpack.c.h.b16 %v742
        %v898 = vunpack.c.l.b16 %v743
        %v899 = vpack.c.b16 %v896, %v893
        %v900 = vpack.c.b16 %v897, %v894
        %v901 = vpack.c.b16 %v898, %v895
        %902 = vrot.lane.b32.xlu0 %v899, 94
        %v903 = vpop.permute.xlu0 %902
        %904 = vrot.lane.b32.xlu0 %v900, 94
        %v905 = vpop.permute.xlu0 %904
        %906 = vrot.lane.b32.xlu0 %v901, 94
        %v907 = vpop.permute.xlu0 %906
        %v908 = vsel %vm583, %v903, %v905
        %v909 = vsel %vm583, %v905, %v907
        %v912 = vld [vmem:[%s3] sm:$0xff]
        %v913 = vld [vmem:[%s3 + $0x8] sm:$0xff]
        %v914 = vld [vmem:[%s217] sm:$0xff]
        %v915 = vld [vmem:[%s217 + $0x8] sm:$0xf]
        %v916 = vld [vmem:[%s217 + $0xc] sm:$0xff]
        %v917 = vld [vmem:[%s217 + $0x14] sm:$0xf]
        %v918 = vunpack.c.l.bf16 %v914
        %v919 = vunpack.c.h.bf16 %v914
        %v920 = vunpack.c.l.bf16 %v915
        %v921 = vunpack.c.l.bf16 %v916
        %v922 = vunpack.c.h.bf16 %v916
        %v923 = vunpack.c.l.bf16 %v917
        %v924 = vld [vmem:[%s4] sm:$0xff]
        %v925 = vld [vmem:[%s4 + $0x8] sm:$0xff]
        %927 = vset.pattern.permute.xlu0 0
        %928 = vperm.xlu0 %927, %v924
        %v929 = vpop.permute.xlu0 %928
        %932 = vset.pattern.permute.xlu0 0
        %933 = vperm.xlu0 %932, %v925
        %v934 = vpop.permute.xlu0 %933
        %v938 = vunpack.c.l.b16 %v912
        %v939 = vunpack.c.h.b16 %v912
        %v940 = vunpack.c.l.b16 %v913
        %v941 = vunpack.c.h.b16 %v913
        %v942 = vpack.c.b16 %v940, %v938
        %v943 = vpack.c.b16 %v941, %v939
        %v946 = vsel %vm611, %v943, 0
        %948 = vmatpush.bf16.msra.mxu0 %v885
        %949 = vmatpush.bf16.msra.mxu0 %v875
        %950 = vmatpush.bf16.msra.mxu0 %v852
        %951 = vmatpush.bf16.msra.mxu0 %v829
        %952 = vmatpush.bf16.msra.mxu0 %v819
        %953 = vmatpush.bf16.msra.mxu0 %v796
        %954 = vmatpush.bf16.msra.mxu0 %v773
        %955 = vmatpush.bf16.msra.mxu0 %v750
        %956 = vmatmul.bf16.gmra.mxu0 %v942
        %v957 = vpop.f32.mrf.mxu0
        %v958 = vadd.f32 %v929, %v957
        %v959 = vpop.f32.mrf.mxu0
        %v960 = vadd.f32 %v934, %v959
        %961 = vdwg.mxu0
        %962 = vmatpush.bf16.msra.mxu0 0
        %963 = vmatpush.bf16.msra.mxu0 0
        %964 = vmatpush.bf16.msra.mxu0 0
        %965 = vmatpush.bf16.msra.mxu0 0
        %966 = vmatpush.bf16.msra.mxu0 0
        %967 = vmatpush.bf16.msra.mxu0 0
        %968 = vmatpush.bf16.msra.mxu0 0
        %969 = vmatpush.bf16.msra.mxu0 %v908
        %970 = vmatmul.bf16.gmra.mxu0 %v946
        %v971 = vpop.f32.mrf.mxu0
        %v972 = vadd.f32 %v958, %v971
        %v973 = vpop.f32.mrf.mxu0
        %v974 = vadd.f32 %v960, %v973
        %975 = vdwg.mxu0
        %976 = vmatpush.bf16.msra.mxu0 %v886
        %977 = vmatpush.bf16.msra.mxu0 %v876
        %978 = vmatpush.bf16.msra.mxu0 %v853
        %979 = vmatpush.bf16.msra.mxu0 %v830
        %980 = vmatpush.bf16.msra.mxu0 %v820
        %981 = vmatpush.bf16.msra.mxu0 %v797
        %982 = vmatpush.bf16.msra.mxu0 %v774
        %983 = vmatpush.bf16.msra.mxu0 %v751
        %984 = vmatmul.bf16.gmra.mxu0 %v942
        %v985 = vpop.f32.mrf.mxu0
        %v986 = vadd.f32 %v929, %v985
        %v987 = vpop.f32.mrf.mxu0
        %v988 = vadd.f32 %v934, %v987
        %989 = vdwg.mxu0
        %990 = vmatpush.bf16.msra.mxu0 0
        %991 = vmatpush.bf16.msra.mxu0 0
        %992 = vmatpush.bf16.msra.mxu0 0
        %993 = vmatpush.bf16.msra.mxu0 0
        %994 = vmatpush.bf16.msra.mxu0 0
        %995 = vmatpush.bf16.msra.mxu0 0
        %996 = vmatpush.bf16.msra.mxu0 0
        %997 = vmatpush.bf16.msra.mxu0 %v909
        %998 = vmatmul.bf16.gmra.mxu0 %v946
        %v999 = vpop.f32.mrf.mxu0
        %v1000 = vadd.f32 %v986, %v999
        %v1001 = vpop.f32.mrf.mxu0
        %v1002 = vadd.f32 %v988, %v1001
        %1003 = vdwg.mxu0
        %1010 = vrot.lane.b32.xlu0 %v918, 111
        %v1011 = vpop.permute.xlu0 %1010
        %1012 = vrot.lane.b32.xlu0 %v919, 111
        %v1013 = vpop.permute.xlu0 %1012
        %1014 = vrot.lane.b32.xlu0 %v920, 111
        %v1015 = vpop.permute.xlu0 %1014
        %1016 = vrot.lane.b32.xlu0 %v921, 111
        %v1017 = vpop.permute.xlu0 %1016
        %1018 = vrot.lane.b32.xlu0 %v922, 111
        %v1019 = vpop.permute.xlu0 %1018
        %1020 = vrot.lane.b32.xlu0 %v923, 111
        %v1021 = vpop.permute.xlu0 %1020
        %vm1022 = vcmask 908288
        %v1023 = vsel %vm1022, %v1011, %v1013
        %v1024 = vsel %vm1022, %v1013, %v1015
        %v1025 = vsel %vm1022, %v1017, %v1019
        %v1026 = vsel %vm1022, %v1019, %v1021
        %v1031 = vadd.f32 %v972, %v1023
        %v1032 = vadd.f32 %v1000, %v1024
        %v1033 = vadd.f32 %v974, %v1025
        %v1034 = vadd.f32 %v1002, %v1026
        %v1035 = vmax.f32 %v1031, 0.0
        %v1036 = vmax.f32 %v1032, 0.0
        %v1037 = vmax.f32 %v1033, 0.0
        %v1038 = vmax.f32 %v1034, 0.0
        %1039 = vst [vmem:[%s244] sm:$0xff] %v1035
        %1040 = vst [vmem:[%s244 + $0x8] sm:$0xff] %v1036
        %1041 = vst [vmem:[%s244 + $0x10] sm:$0xff] %v1037
        %1042 = vst [vmem:[%s244 + $0x18] sm:$0xff] %v1038
        %s1043 = sand.u32 %s140, 1
        %s1044 = scalar_lea.sflag [#allocation5], %s1043
        %s1045 = sand.u32 %s140, 1
        %s1046 = smul.addr %s1045, 32
        %s1047 = scalar_lea.vmem [#allocation6], %s1046
        // Predicated region
        $region45: #{tpu_custom_call.1} parent=39 // pred_check
          %p1048 = pneg %p150
        $region46: #{tpu_custom_call.1} parent=39 // pred_check_branch
          %1050 = sbr.rel (%p1048) target = $region48
        $region47: #{tpu_custom_call.1} parent=39 // pred_region
          %1052 = vsyncadd %s1044, 0
          %s1053 = smul.addr %s22, 4
          %s1054 = smul.addr %s1053, 8
          %s1055 = scalar_lea.hbm %s5, %s1054
          %s1056 = sshll.u32 %s1047, 4
          %s1057 = int_to_ptr.vmem [resolvable:$true] %s1056
          %s1058 = sshll.u32 %s1055, 4
          %s1059 = int_to_ptr.hbm [resolvable:$true] %s1058
          %1064 = dma.vmem_to_hbm [thread:$0]  %s1057, 512, %s1059, %s1044, 256, 256, 16
        $region48: #{tpu_custom_call.1} parent=39 // pred_fallthru
          _
      $region40: #{tpu_custom_call.1} parent=5 // pred_fallthru
        _
      %p1065 = scmp.le.s32.totalorder 2, %s17
      // Predicated region
      $region49: #{tpu_custom_call.1} parent=5 // pred_check
        %p1066 = pneg %p1065
      $region50: #{tpu_custom_call.1} parent=5 // pred_check_branch
        %1068 = sbr.rel (%p1066) target = $region52
      $region51: #{tpu_custom_call.1} parent=5 // pred_region
        %s1069 = ssub.s32 %s17, 2
        // Predicated region
        $region53: #{tpu_custom_call.1} parent=51 // pred_check
          %p1070 = pneg %p156
        $region54: #{tpu_custom_call.1} parent=51 // pred_check_branch
          %1072 = sbr.rel (%p1070) target = $region56
        $region55: #{tpu_custom_call.1} parent=51 // pred_region
          %s1073 = sand.u32 %s141, 1
          %s1074 = scalar_lea.sflag [#allocation5], %s1073
          %s1075 = sand.u32 %s141, 1
          %s1076 = smul.addr %s1075, 32
          %s1077 = scalar_lea.vmem [#allocation6], %s1076
          %1079 = dma.done %s1074, 512
        $region56: #{tpu_custom_call.1} parent=51 // pred_fallthru
          _
      $region52: #{tpu_custom_call.1} parent=5 // pred_fallthru
        _
    $region6: #{tpu_custom_call.1} parent=1 // loop_footer
      %s21 = sadd.s32 1, %s17
    $region7: #{tpu_custom_call.1} parent=1 // loop_footer_branch
      %16 = sbr.rel target = $region3
    $region8: #{tpu_custom_call.1} parent=1 // loop_exit
      _
    %1080 = vsyncpa [#allocation4], 1
    %s1081 = scalar_lea.sflag [#allocation4], 1
    %1082 = vsyncpa %s1081, 1
    %1083 = vsyncpa [#allocation5], 1
    %s1084 = scalar_lea.sflag [#allocation5], 1
    %1085 = vsyncpa %s1084, 1

</llo_original>
